<compile_context>
chip_gen: v6e
topology: v6e:2x2x1
jax: 0.10.0
libtpu: 0.0.40
codegen_flags: <defaults>
</compile_context>

<pallas_src>
import jax
import jax.numpy as jnp
import numpy as np
from jax.experimental import pallas as pl
from jax.experimental.pallas import tpu as pltpu


def _round_up(x, m):
    return (x + m - 1) // m * m


_HW = 16                 # 4x4 spatial map (fixed by the module)
_MAX_ROWS_BLOCK = 512    # rows (= B*16 dim) per grid step; multiple of 16


# ------------------------- pass 1: BN statistics -----------------------------
def bn_stats_kernel(patches_ref, w1_ref, sum_ref, sumsq_ref):
    @pl.when(pl.program_id(0) == 0)
    def _():
        sum_ref[...] = jnp.zeros_like(sum_ref)
        sumsq_ref[...] = jnp.zeros_like(sumsq_ref)

    # conv3x3 (padding=1, stride=1, no bias) as an im2col matmul on the MXU:
    # bf16 operands, f32 accumulation.  Zero-padded rows contribute exactly 0.
    y = jnp.dot(patches_ref[...], w1_ref[...],
                preferred_element_type=jnp.float32)            # (rows, cp)
    sum_ref[...] += jnp.sum(y, axis=0, keepdims=True)          # sublane reduce
    sumsq_ref[...] += jnp.sum(y * y, axis=0, keepdims=True)


# ---------------- pass 2: BN apply + LeakyReLU + 4x4/4 conv + sigmoid --------
def logits_kernel(patches_ref, w1_ref, scale_ref, shift_ref, w2_ref, bias_ref,
                  out_ref):
    rows = patches_ref.shape[0]
    hw = w2_ref.shape[0]            # 16 spatial positions
    bblk = rows // hw               # batch elements in this block
    cp = w1_ref.shape[1]            # padded Cout (128)

    # Recompute the matmul (cheaper than spilling y to HBM).
    y = jnp.dot(patches_ref[...], w1_ref[...],
                preferred_element_type=jnp.float32)            # (rows, cp)

    # Folded BatchNorm affine: 1 mul + 1 add per element.
    y = y * scale_ref[...] + shift_ref[...]

    # LeakyReLU(0.2) without compare+select.
    y = jnp.maximum(y, 0.2 * y)

    # Conv2d(Cout -> 1, 4x4, stride 4) on a 4x4 map == per-batch full reduction
    # against w2, broadcast in-register (no batch-tiled copy, no O(B^2) work).
    w2 = w2_ref[...].astype(jnp.float32)                       # (hw, cp)
    yw = y.reshape(bblk, hw, cp) * w2[None, :, :]              # in-register
    t = jnp.sum(yw, axis=1)                 # sublane reduce first -> (bblk, cp)
    logits = jnp.sum(t, axis=1, keepdims=True) + bias_ref[0]   # 1 XLU reduce/row

    # Lane-dense store: replicate the logit across all 128 lanes.
    out_ref[...] = jnp.broadcast_to(jax.nn.sigmoid(logits), out_ref.shape)


# ----------------------------- parameter setup -------------------------------
def spectral_normalize(w, n_iter=50):
    """Divide w by the largest singular value of w.reshape(out, -1)."""
    out_ch = w.shape[0]
    wm = w.reshape(out_ch, -1)
    u = jax.random.normal(jax.random.PRNGKey(42), (out_ch,), dtype=jnp.float32)
    u = u / (jnp.linalg.norm(u) + 1e-12)
    v = None
    for _ in range(n_iter):
        v = wm.T @ u
        v = v / (jnp.linalg.norm(v) + 1e-12)
        u = wm @ v
        u = u / (jnp.linalg.norm(u) + 1e-12)
    sigma = u @ (wm @ v)
    return w / sigma


def init_params(key, ndf, nef):
    c_dim = ndf * 8
    cin = c_dim + nef
    k1, k2, k3, k4, k5 = jax.random.split(key, 5)
    w1 = 0.05 * jax.random.normal(k1, (c_dim, cin, 3, 3), jnp.float32)
    w2 = 0.05 * jax.random.normal(k2, (1, c_dim, 4, 4), jnp.float32)
    gamma = 1.0 + 0.1 * jax.random.normal(k3, (c_dim,), jnp.float32)
    beta = 0.1 * jax.random.normal(k4, (c_dim,), jnp.float32)
    b2 = 0.1 * jax.random.normal(k5, (1,), jnp.float32)
    return {
        "w1": spectral_normalize(w1),   # conv3x3 weight (spectral-norm'd)
        "w2": spectral_normalize(w2),   # 4x4/4 conv weight (spectral-norm'd)
        "gamma": gamma, "beta": beta, "b2": b2,
    }


def pack_params(params):
    """One-time repack of weights into the padded, kernel-friendly layout."""
    w1 = params["w1"]                          # (Cout, Cin, 3, 3)
    cout, cin = w1.shape[0], w1.shape[1]
    k = 9 * cin
    k_pad = _round_up(k, 128)
    cp = _round_up(cout, 128)

    # (Cout, Cin, 3, 3) -> (kh, kw, Cin, Cout) -> (9*Cin, Cout), zero-pad, bf16
    w1m = jnp.transpose(w1, (2, 3, 1, 0)).reshape(k, cout)
    w1p = jnp.zeros((k_pad, cp), jnp.bfloat16)
    w1p = w1p.at[:k, :cout].set(w1m.astype(jnp.bfloat16))

    gamma = jnp.zeros((1, cp), jnp.float32).at[0, :cout].set(params["gamma"])
    beta = jnp.zeros((1, cp), jnp.float32).at[0, :cout].set(params["beta"])

    # (1, Cout, 4, 4) -> (4, 4, Cout) -> (16, Cout), zero-pad, bf16
    w2f = jnp.transpose(params["w2"][0], (1, 2, 0)).reshape(_HW, cout)
    w2p = jnp.zeros((_HW, cp), jnp.bfloat16)
    w2p = w2p.at[:, :cout].set(w2f.astype(jnp.bfloat16))

    bias = params["b2"].reshape(1).astype(jnp.float32)
    return {"w1": w1p, "gamma": gamma, "beta": beta, "w2": w2p, "bias": bias}


# ----------------------------- fused forward ---------------------------------
@jax.jit
def d_get_logits_forward(h_code, c_code, packed):
    B, ch, H, W = h_code.shape
    nef = c_code.shape[1]
    cin = ch + nef
    k = 9 * cin
    k_pad, cp = packed["w1"].shape
    hw = H * W
    m = B * hw                                   # real rows (BN population)

    # Condition branch: broadcast c_code over the 4x4 map, concat on channels
    # (channels-last so each im2col patch is lane-contiguous).  Cast to bf16
    # up-front so all prep intermediates + the patch matrix stay half-width.
    h_nhwc = jnp.transpose(h_code, (0, 2, 3, 1)).astype(jnp.bfloat16)
    c4 = jnp.broadcast_to(c_code.astype(jnp.bfloat16)[:, None, None, :],
                          (B, H, W, nef))
    x = jnp.concatenate([h_nhwc, c4], axis=-1)                  # (B,H,W,cin)

    # im2col: (B*H*W, 9*cin) bf16 patch matrix.
    xp = jnp.pad(x, ((0, 0), (1, 1), (1, 1), (0, 0)))
    pieces = [xp[:, dh:dh + H, dw:dw + W, :]
              for dh in range(3) for dw in range(3)]
    patches = jnp.concatenate(pieces, axis=-1).reshape(m, k)

    # Pad K to a lane multiple and M to a whole number of row blocks.  Padded
    # rows are all-zero, so they add 0 to the BN sums (divided by the real m)
    # and their (garbage) logits are sliced off below.
    rows_block = m if m <= _MAX_ROWS_BLOCK else _MAX_ROWS_BLOCK
    m_pad = _round_up(m, rows_block)
    patches = jnp.pad(patches, ((0, m_pad - m), (0, k_pad - k)))
    grid = (m_pad // rows_block,)

    # ---- pass 1: per-channel sum / sum-of-squares (resident accumulators) ---
    ssum, ssq = pl.pallas_call(
        bn_stats_kernel,
        out_shape=(jax.ShapeDtypeStruct((1, cp), jnp.float32),
                   jax.ShapeDtypeStruct((1, cp), jnp.float32)),
        grid=grid,
        in_specs=[pl.BlockSpec((rows_block, k_pad), lambda i: (i, 0)),
                  pl.BlockSpec((k_pad, cp), lambda i: (0, 0))],
        out_specs=(pl.BlockSpec((1, cp), lambda i: (0, 0)),
                   pl.BlockSpec((1, cp), lambda i: (0, 0))),
        compiler_params=pltpu.CompilerParams(
            dimension_semantics=("arbitrary",),
            vmem_limit_bytes=32 * 1024 * 1024),
        cost_estimate=pl.CostEstimate(
            flops=2 * m_pad * k_pad * cp + 3 * m_pad * cp,
            transcendentals=0,
            bytes_accessed=m_pad * k_pad * 2 + k_pad * cp * 2 + 2 * cp * 4),
    )(patches, packed["w1"])

    # Tiny (1, cp) math: fold BN affine into scale/shift (training-mode BN,
    # biased variance, eps=1e-5).  Padded channels have gamma=beta=0 -> 0.
    inv_m = 1.0 / m
    mean = ssum * inv_m
    var = jnp.maximum(ssq * inv_m - mean * mean, 0.0)
    scale = packed["gamma"] * jax.lax.rsqrt(var + 1e-5)
    shift = packed["beta"] - mean * scale

    # ---- pass 2: recompute matmul per block, BN/LeakyReLU/conv2/sigmoid -----
    out = pl.pallas_call(
        logits_kernel,
        out_shape=jax.ShapeDtypeStruct((m_pad // hw, 128), jnp.float32),
        grid=grid,
        in_specs=[pl.BlockSpec((rows_block, k_pad), lambda i: (i, 0)),
                  pl.BlockSpec((k_pad, cp), lambda i: (0, 0)),
                  pl.BlockSpec((1, cp), lambda i: (0, 0)),
                  pl.BlockSpec((1, cp), lambda i: (0, 0)),
                  pl.BlockSpec((hw, cp), lambda i: (0, 0)),
                  pl.BlockSpec(memory_space=pltpu.MemorySpace.SMEM)],
        out_specs=pl.BlockSpec((rows_block // hw, 128), lambda i: (i, 0)),
        compiler_params=pltpu.CompilerParams(
            dimension_semantics=("parallel",),
            vmem_limit_bytes=32 * 1024 * 1024),
        cost_estimate=pl.CostEstimate(
            flops=2 * m_pad * k_pad * cp + 6 * m_pad * cp,
            transcendentals=m_pad // hw,
            bytes_accessed=(m_pad * k_pad * 2 + k_pad * cp * 2
                            + (2 + hw) * cp * 4 + (m_pad // hw) * 128 * 4)),
    )(patches, packed["w1"], scale, shift, packed["w2"], packed["bias"])

    return out[:B, 0]                                             # == view(-1)


# ----------------------------- pure-JAX reference ----------------------------
def reference_forward(h_code, c_code, params):
    B, _, H, W = h_code.shape
    nef = c_code.shape[1]
    c4 = jnp.broadcast_to(c_code[:, :, None, None], (B, nef, H, W))
    x = jnp.concatenate([h_code, c4], axis=1)
    y = jax.lax.conv_general_dilated(
        x, params["w1"], (1, 1), ((1, 1), (1, 1)),
        dimension_numbers=("NCHW", "OIHW", "NCHW"))
    mean = jnp.mean(y, axis=(0, 2, 3), keepdims=True)
    var = jnp.mean((y - mean) ** 2, axis=(0, 2, 3), keepdims=True)
    y = (y - mean) / jnp.sqrt(var + 1e-5)
    y = y * params["gamma"][None, :, None, None] + params["beta"][None, :, None, None]
    y = jnp.where(y > 0.0, y, 0.2 * y)
    z = jax.lax.conv_general_dilated(
        y, params["w2"], (4, 4), "VALID",
        dimension_numbers=("NCHW", "OIHW", "NCHW"))
    z = z + params["b2"][None, :, None, None]
    return jax.nn.sigmoid(z).reshape(-1)


# ----------------------------------- main ------------------------------------
if __name__ == "__main__":
    ndf, nef = 4, 8                       # ndf*8 = 32 feature channels
    key = jax.random.PRNGKey(0)
    kh, kc, kp = jax.random.split(key, 3)
    params = init_params(kp, ndf, nef)
    packed = pack_params(params)

    # B=2: single-grid-step path.  B=40: multi-step grid (512-row blocks) with
    # zero-padded rows, exercising the two-pass BN accumulator + slicing.
    for B in (2, 40):
        kb = jax.random.fold_in(kh, B)
        h_code = jax.random.normal(kb, (B, ndf * 8, 4, 4), jnp.float32)
        c_code = jax.random.normal(jax.random.fold_in(kc, B), (B, nef), jnp.float32)

        out = jax.block_until_ready(d_get_logits_forward(h_code, c_code, packed))
        ref = jax.block_until_ready(reference_forward(h_code, c_code, params))

        assert out.shape == (B,), out.shape
        np.testing.assert_allclose(np.asarray(out), np.asarray(ref),
                                   rtol=1e-2, atol=1e-2)
    print("KERNEL_OK")
</pallas_src>

<mosaic_0001>
module attributes {stable_mosaic.version = 11 : i64} {
  func.func @bn_stats_kernel(%arg0: i32, %arg1: memref<32x384xbf16, #tpu.memory_space<vmem>>, %arg2: memref<384x128xbf16, #tpu.memory_space<vmem>>, %arg3: memref<1x128xf32, #tpu.memory_space<vmem>>, %arg4: memref<1x128xf32, #tpu.memory_space<vmem>>) attributes {dimension_semantics = [#tpu.dimension_semantics<arbitrary>], iteration_bounds = array<i64: 1>, scalar_prefetch = 0 : i64, scratch_operands = 0 : i64, tpu.core_type = #tpu.core_type<tc>, window_params = [{transform_indices = @transform_0, window_bounds = array<i64: 32, 384>}, {pipeline_mode = #tpu.pipeline_mode<synchronous>, transform_indices = @transform_1, window_bounds = array<i64: 384, 128>}, {pipeline_mode = #tpu.pipeline_mode<synchronous>, transform_indices = @transform_2, window_bounds = array<i64: 1, 128>}, {pipeline_mode = #tpu.pipeline_mode<synchronous>, transform_indices = @transform_3, window_bounds = array<i64: 1, 128>}]} {
    %c0_i32 = arith.constant 0 : i32
    %0 = arith.cmpi eq, %arg0, %c0_i32 : i32
    %1 = arith.extui %0 : i1 to i32
    %c0_i32_0 = arith.constant 0 : i32
    %2 = arith.cmpi ne, %1, %c0_i32_0 : i32
    scf.if %2 {
      %cst_14 = arith.constant 0.000000e+00 : f32
      %17 = vector.broadcast %cst_14 : f32 to vector<1x128xf32>
      %c0_15 = arith.constant 0 : index
      %c0_16 = arith.constant 0 : index
      %18 = vector.load %arg3[%c0_15, %c0_16] : memref<1x128xf32, #tpu.memory_space<vmem>>, vector<1x128xf32>
      tpu.vector_store %arg3[%c0_15, %c0_16], %17 {strides = array<i32>} : memref<1x128xf32, #tpu.memory_space<vmem>>, vector<1x128xf32>,
      %cst_17 = arith.constant 0.000000e+00 : f32
      %19 = vector.broadcast %cst_17 : f32 to vector<1x128xf32>
      %c0_18 = arith.constant 0 : index
      %c0_19 = arith.constant 0 : index
      %20 = vector.load %arg4[%c0_18, %c0_19] : memref<1x128xf32, #tpu.memory_space<vmem>>, vector<1x128xf32>
      tpu.vector_store %arg4[%c0_18, %c0_19], %19 {strides = array<i32>} : memref<1x128xf32, #tpu.memory_space<vmem>>, vector<1x128xf32>,
    } else {
    }
    %c0 = arith.constant 0 : index
    %c0_1 = arith.constant 0 : index
    %3 = vector.load %arg1[%c0, %c0_1] : memref<32x384xbf16, #tpu.memory_space<vmem>>, vector<32x384xbf16>
    %c0_2 = arith.constant 0 : index
    %c0_3 = arith.constant 0 : index
    %4 = vector.load %arg2[%c0_2, %c0_3] : memref<384x128xbf16, #tpu.memory_space<vmem>>, vector<384x128xbf16>
    %cst = arith.constant dense<0.000000e+00> : vector<32x128xf32>
    %5 = tpu.matmul %3, %4, %cst {dimension_numbers = #tpu.dot_dimension_numbers<[1], [0], [0], [1], [0, 0, 1, 1], [], []>} : vector<32x384xbf16>, vector<384x128xbf16>, vector<32x128xf32> -> vector<32x128xf32>
    %c0_4 = arith.constant 0 : index
    %c0_5 = arith.constant 0 : index
    %6 = vector.load %arg3[%c0_4, %c0_5] : memref<1x128xf32, #tpu.memory_space<vmem>>, vector<1x128xf32>
    %cst_6 = arith.constant dense<0.000000e+00> : vector<128xf32>
    %7 = vector.multi_reduction <add>, %5, %cst_6 [0] : vector<32x128xf32> to vector<128xf32>
    %8 = vector.shape_cast %7 : vector<128xf32> to vector<1x128xf32>
    %9 = arith.addf %6, %8 : vector<1x128xf32>
    %c0_7 = arith.constant 0 : index
    %c0_8 = arith.constant 0 : index
    %10 = vector.load %arg3[%c0_7, %c0_8] : memref<1x128xf32, #tpu.memory_space<vmem>>, vector<1x128xf32>
    tpu.vector_store %arg3[%c0_7, %c0_8], %9 {strides = array<i32>} : memref<1x128xf32, #tpu.memory_space<vmem>>, vector<1x128xf32>,
    %c0_9 = arith.constant 0 : index
    %c0_10 = arith.constant 0 : index
    %11 = vector.load %arg4[%c0_9, %c0_10] : memref<1x128xf32, #tpu.memory_space<vmem>>, vector<1x128xf32>
    %12 = arith.mulf %5, %5 : vector<32x128xf32>
    %cst_11 = arith.constant dense<0.000000e+00> : vector<128xf32>
    %13 = vector.multi_reduction <add>, %12, %cst_11 [0] : vector<32x128xf32> to vector<128xf32>
    %14 = vector.shape_cast %13 : vector<128xf32> to vector<1x128xf32>
    %15 = arith.addf %11, %14 : vector<1x128xf32>
    %c0_12 = arith.constant 0 : index
    %c0_13 = arith.constant 0 : index
    %16 = vector.load %arg4[%c0_12, %c0_13] : memref<1x128xf32, #tpu.memory_space<vmem>>, vector<1x128xf32>
    tpu.vector_store %arg4[%c0_12, %c0_13], %15 {strides = array<i32>} : memref<1x128xf32, #tpu.memory_space<vmem>>, vector<1x128xf32>,
    return
  }
  func.func @transform_0(%arg0: i32) -> (i32, i32) {
    %c0_i32 = arith.constant 0 : i32
    %c0_i32_0 = arith.constant 0 : i32
    return %arg0, %c0_i32 : i32, i32
  }
  func.func @transform_1(%arg0: i32) -> (i32, i32) {
    %c0_i32 = arith.constant 0 : i32
    %c0_i32_0 = arith.constant 0 : i32
    %c0_i32_1 = arith.constant 0 : i32
    return %c0_i32, %c0_i32_0 : i32, i32
  }
  func.func @transform_2(%arg0: i32) -> (i32, i32) {
    %c0_i32 = arith.constant 0 : i32
    %c0_i32_0 = arith.constant 0 : i32
    %c0_i32_1 = arith.constant 0 : i32
    return %c0_i32, %c0_i32_0 : i32, i32
  }
  func.func @transform_3(%arg0: i32) -> (i32, i32) {
    %c0_i32 = arith.constant 0 : i32
    %c0_i32_0 = arith.constant 0 : i32
    %c0_i32_1 = arith.constant 0 : i32
    return %c0_i32, %c0_i32_0 : i32, i32
  }
}

module attributes {stable_mosaic.version = 11 : i64} {
  func.func @logits_kernel(%arg0: i32, %arg1: memref<32x384xbf16, #tpu.memory_space<vmem>>, %arg2: memref<384x128xbf16, #tpu.memory_space<vmem>>, %arg3: memref<1x128xf32, #tpu.memory_space<vmem>>, %arg4: memref<1x128xf32, #tpu.memory_space<vmem>>, %arg5: memref<16x128xbf16, #tpu.memory_space<vmem>>, %arg6: memref<1xf32, #tpu.memory_space<smem>>, %arg7: memref<2x128xf32, #tpu.memory_space<vmem>>) attributes {dimension_semantics = [#tpu.dimension_semantics<parallel>], iteration_bounds = array<i64: 1>, scalar_prefetch = 0 : i64, scratch_operands = 0 : i64, tpu.core_type = #tpu.core_type<tc>, window_params = [{transform_indices = @transform_0, window_bounds = array<i64: 32, 384>}, {pipeline_mode = #tpu.pipeline_mode<synchronous>, transform_indices = @transform_1, window_bounds = array<i64: 384, 128>}, {pipeline_mode = #tpu.pipeline_mode<synchronous>, transform_indices = @transform_2, window_bounds = array<i64: 1, 128>}, {pipeline_mode = #tpu.pipeline_mode<synchronous>, transform_indices = @transform_3, window_bounds = array<i64: 1, 128>}, {pipeline_mode = #tpu.pipeline_mode<synchronous>, transform_indices = @transform_4, window_bounds = array<i64: 16, 128>}, {transform_indices = @transform_5, window_bounds = array<i64: 1>}, {transform_indices = @transform_6, window_bounds = array<i64: 2, 128>}]} {
    %c0 = arith.constant 0 : index
    %c0_0 = arith.constant 0 : index
    %0 = vector.load %arg1[%c0, %c0_0] : memref<32x384xbf16, #tpu.memory_space<vmem>>, vector<32x384xbf16>
    %c0_1 = arith.constant 0 : index
    %c0_2 = arith.constant 0 : index
    %1 = vector.load %arg2[%c0_1, %c0_2] : memref<384x128xbf16, #tpu.memory_space<vmem>>, vector<384x128xbf16>
    %cst = arith.constant dense<0.000000e+00> : vector<32x128xf32>
    %2 = tpu.matmul %0, %1, %cst {dimension_numbers = #tpu.dot_dimension_numbers<[1], [0], [0], [1], [0, 0, 1, 1], [], []>} : vector<32x384xbf16>, vector<384x128xbf16>, vector<32x128xf32> -> vector<32x128xf32>
    %c0_3 = arith.constant 0 : index
    %c0_4 = arith.constant 0 : index
    %3 = vector.load %arg3[%c0_3, %c0_4] : memref<1x128xf32, #tpu.memory_space<vmem>>, vector<1x128xf32>
    %4 = vector.broadcast %3 : vector<1x128xf32> to vector<32x128xf32>
    %5 = arith.mulf %2, %4 : vector<32x128xf32>
    %c0_5 = arith.constant 0 : index
    %c0_6 = arith.constant 0 : index
    %6 = vector.load %arg4[%c0_5, %c0_6] : memref<1x128xf32, #tpu.memory_space<vmem>>, vector<1x128xf32>
    %7 = vector.broadcast %6 : vector<1x128xf32> to vector<32x128xf32>
    %8 = arith.addf %5, %7 : vector<32x128xf32>
    %cst_7 = arith.constant 2.000000e-01 : f32
    %9 = vector.broadcast %cst_7 : f32 to vector<32x128xf32>
    %10 = arith.mulf %9, %8 : vector<32x128xf32>
    %11 = arith.maximumf %8, %10 : vector<32x128xf32>
    %c0_8 = arith.constant 0 : index
    %c0_9 = arith.constant 0 : index
    %12 = vector.load %arg5[%c0_8, %c0_9] : memref<16x128xbf16, #tpu.memory_space<vmem>>, vector<16x128xbf16>
    %13 = arith.extf %12 : vector<16x128xbf16> to vector<16x128xf32>
    %14 = vector.shape_cast %11 : vector<32x128xf32> to vector<2x16x128xf32>
    %15 = vector.shape_cast %13 : vector<16x128xf32> to vector<1x16x128xf32>
    %16 = vector.broadcast %15 : vector<1x16x128xf32> to vector<2x16x128xf32>
    %17 = arith.mulf %14, %16 : vector<2x16x128xf32>
    %cst_10 = arith.constant dense<0.000000e+00> : vector<2x128xf32>
    %18 = vector.multi_reduction <add>, %17, %cst_10 [1] : vector<2x16x128xf32> to vector<2x128xf32>
    %cst_11 = arith.constant dense<0.000000e+00> : vector<2xf32>
    %19 = vector.multi_reduction <add>, %18, %cst_11 [1] : vector<2x128xf32> to vector<2xf32>
    %20 = vector.shape_cast %19 : vector<2xf32> to vector<2x1xf32>
    %c0_12 = arith.constant 0 : index
    %21 = memref.load %arg6[%c0_12] : memref<1xf32, #tpu.memory_space<smem>>
    %22 = vector.broadcast %21 : f32 to vector<2x1xf32>
    %23 = arith.addf %20, %22 : vector<2x1xf32>
    %24 = arith.negf %23 : vector<2x1xf32>
    %25 = math.exp %24 : vector<2x1xf32>
    %cst_13 = arith.constant 1.000000e+00 : f32
    %26 = vector.broadcast %cst_13 : f32 to vector<2x1xf32>
    %27 = arith.addf %26, %25 : vector<2x1xf32>
    %28 = arith.divf %26, %27 : vector<2x1xf32>
    %29 = vector.shape_cast %28 : vector<2x1xf32> to vector<2x1xf32>
    %30 = vector.broadcast %29 : vector<2x1xf32> to vector<2x128xf32>
    %c0_14 = arith.constant 0 : index
    %c0_15 = arith.constant 0 : index
    %31 = vector.load %arg7[%c0_14, %c0_15] : memref<2x128xf32, #tpu.memory_space<vmem>>, vector<2x128xf32>
    tpu.vector_store %arg7[%c0_14, %c0_15], %30 {strides = array<i32>} : memref<2x128xf32, #tpu.memory_space<vmem>>, vector<2x128xf32>,
    return
  }
  func.func @transform_0(%arg0: i32) -> (i32, i32) {
    %c0_i32 = arith.constant 0 : i32
    %c0_i32_0 = arith.constant 0 : i32
    return %arg0, %c0_i32 : i32, i32
  }
  func.func @transform_1(%arg0: i32) -> (i32, i32) {
    %c0_i32 = arith.constant 0 : i32
    %c0_i32_0 = arith.constant 0 : i32
    %c0_i32_1 = arith.constant 0 : i32
    return %c0_i32, %c0_i32_0 : i32, i32
  }
  func.func @transform_2(%arg0: i32) -> (i32, i32) {
    %c0_i32 = arith.constant 0 : i32
    %c0_i32_0 = arith.constant 0 : i32
    %c0_i32_1 = arith.constant 0 : i32
    return %c0_i32, %c0_i32_0 : i32, i32
  }
  func.func @transform_3(%arg0: i32) -> (i32, i32) {
    %c0_i32 = arith.constant 0 : i32
    %c0_i32_0 = arith.constant 0 : i32
    %c0_i32_1 = arith.constant 0 : i32
    return %c0_i32, %c0_i32_0 : i32, i32
  }
  func.func @transform_4(%arg0: i32) -> (i32, i32) {
    %c0_i32 = arith.constant 0 : i32
    %c0_i32_0 = arith.constant 0 : i32
    %c0_i32_1 = arith.constant 0 : i32
    return %c0_i32, %c0_i32_0 : i32, i32
  }
  func.func @transform_5(%arg0: i32) -> i32 {
    %c0_i32 = arith.constant 0 : i32
    %c0_i32_0 = arith.constant 0 : i32
    return %c0_i32 : i32
  }
  func.func @transform_6(%arg0: i32) -> (i32, i32) {
    %c0_i32 = arith.constant 0 : i32
    %c0_i32_0 = arith.constant 0 : i32
    return %arg0, %c0_i32 : i32, i32
  }
}

</mosaic_0001>

<llo_original>
// kernel: d_get_logits_forward.2
$region0: #{d_get_logits_forward.2}
  #allocation0 [shape = 'u32[]', space=smem, size = 0x4, offset = 0x4, fixed_abs, tag = 'smem constant byte address 0x4 - core index']
  #allocation1 [shape = 'u32[144,128]{1,0:T(1,128)}', space=vmem, size = 0x12000, scoped, tag = 'internal scratch']
  %s0 = inlined_call_operand.vmem [shape: bf16[32,384], index: 0, kind: input, shape index: {}]
  %s1 = inlined_call_operand.vmem [shape: bf16[384,128], index: 1, kind: input, shape index: {}]
  %s2 = inlined_call_operand.vmem [shape: f32[1,128], index: 2, kind: output, shape index: {0}]
  %s3 = inlined_call_operand.vmem [shape: f32[1,128], index: 3, kind: output, shape index: {1}]
  %4 = xla_tuple %s2, %s3
  %s5 = sld [smem:[#allocation0]]
  $region30: #{d_get_logits_forward.2} parent=0
    _
  %s7 = ssub.s32 1, %s5
  %s8 = scalar_select 0, %s7, %s5
  // Predicated region
  $region2: #{d_get_logits_forward.2} parent=0 // pred_check
    _
  $region3: #{d_get_logits_forward.2} parent=0 // pred_check_branch
    %10 = sbr.rel (0) target = $region5
  $region4: #{d_get_logits_forward.2} parent=0 // pred_region
    _
  $region5: #{d_get_logits_forward.2} parent=0 // pred_fallthru
    _
  // Predicated region
  $region6: #{d_get_logits_forward.2} parent=0 // pred_check
    _
  $region7: #{d_get_logits_forward.2} parent=0 // pred_check_branch
    %12 = sbr.rel (0) target = $region9
  $region8: #{d_get_logits_forward.2} parent=0 // pred_region
    _
  $region9: #{d_get_logits_forward.2} parent=0 // pred_fallthru
    _
  %p14 = scmp.eq.s32.totalorder 0, 0
  // Predicated region
  $region10: #{d_get_logits_forward.2} parent=0 // pred_check
    %p15 = pneg %p14
  $region11: #{d_get_logits_forward.2} parent=0 // pred_check_branch
    %17 = sbr.rel (%p15) target = $region13
  $region12: #{d_get_logits_forward.2} parent=0 // pred_region
    %18 = vst [vmem:[%s2] sm:$0x1] 0.0
    %19 = vst [vmem:[%s3] sm:$0x1] 0.0
  $region13: #{d_get_logits_forward.2} parent=0 // pred_fallthru
    _
  %v20 = vld [vmem:[%s0] sm:$0xff]
  %v21 = vld [vmem:[%s0 + $0x8] sm:$0xf]
  %v22 = vld [vmem:[%s0 + $0xc] sm:$0xff]
  %v23 = vld [vmem:[%s0 + $0x14] sm:$0xf]
  %v24 = vld [vmem:[%s0 + $0x18] sm:$0xff]
  %v25 = vld [vmem:[%s0 + $0x20] sm:$0xf]
  %v26 = vld [vmem:[%s0 + $0x24] sm:$0xff]
  %v27 = vld [vmem:[%s0 + $0x2c] sm:$0xf]
  %v28 = vld [vmem:[%s1] sm:$0xf]
  %v29 = vld [vmem:[%s1 + $0x4] sm:$0xf]
  %v30 = vld [vmem:[%s1 + $0x8] sm:$0xf]
  %v31 = vld [vmem:[%s1 + $0xc] sm:$0xf]
  %v32 = vld [vmem:[%s1 + $0x10] sm:$0xf]
  %v33 = vld [vmem:[%s1 + $0x14] sm:$0xf]
  %v34 = vld [vmem:[%s1 + $0x18] sm:$0xf]
  %v35 = vld [vmem:[%s1 + $0x1c] sm:$0xf]
  %v36 = vld [vmem:[%s1 + $0x20] sm:$0xf]
  %v37 = vld [vmem:[%s1 + $0x24] sm:$0xf]
  %v38 = vld [vmem:[%s1 + $0x28] sm:$0xf]
  %v39 = vld [vmem:[%s1 + $0x2c] sm:$0xf]
  %v40 = vld [vmem:[%s1 + $0x30] sm:$0xf]
  %v41 = vld [vmem:[%s1 + $0x34] sm:$0xf]
  %v42 = vld [vmem:[%s1 + $0x38] sm:$0xf]
  %v43 = vld [vmem:[%s1 + $0x3c] sm:$0xf]
  %v44 = vld [vmem:[%s1 + $0x40] sm:$0xf]
  %v45 = vld [vmem:[%s1 + $0x44] sm:$0xf]
  %v46 = vld [vmem:[%s1 + $0x48] sm:$0xf]
  %v47 = vld [vmem:[%s1 + $0x4c] sm:$0xf]
  %v48 = vld [vmem:[%s1 + $0x50] sm:$0xf]
  %v49 = vld [vmem:[%s1 + $0x54] sm:$0xf]
  %v50 = vld [vmem:[%s1 + $0x58] sm:$0xf]
  %v51 = vld [vmem:[%s1 + $0x5c] sm:$0xf]
  %v52 = vld [vmem:[%s1 + $0x60] sm:$0xf]
  %v53 = vld [vmem:[%s1 + $0x64] sm:$0xf]
  %v54 = vld [vmem:[%s1 + $0x68] sm:$0xf]
  %v55 = vld [vmem:[%s1 + $0x6c] sm:$0xf]
  %v56 = vld [vmem:[%s1 + $0x70] sm:$0xf]
  %v57 = vld [vmem:[%s1 + $0x74] sm:$0xf]
  %v58 = vld [vmem:[%s1 + $0x78] sm:$0xf]
  %v59 = vld [vmem:[%s1 + $0x7c] sm:$0xf]
  %v60 = vld [vmem:[%s1 + $0x80] sm:$0xf]
  %v61 = vld [vmem:[%s1 + $0x84] sm:$0xf]
  %v62 = vld [vmem:[%s1 + $0x88] sm:$0xf]
  %v63 = vld [vmem:[%s1 + $0x8c] sm:$0xf]
  %v64 = vld [vmem:[%s1 + $0x90] sm:$0xf]
  %v65 = vld [vmem:[%s1 + $0x94] sm:$0xf]
  %v66 = vld [vmem:[%s1 + $0x98] sm:$0xf]
  %v67 = vld [vmem:[%s1 + $0x9c] sm:$0xf]
  %v68 = vld [vmem:[%s1 + $0xa0] sm:$0xf]
  %v69 = vld [vmem:[%s1 + $0xa4] sm:$0xf]
  %v70 = vld [vmem:[%s1 + $0xa8] sm:$0xf]
  %v71 = vld [vmem:[%s1 + $0xac] sm:$0xf]
  %v72 = vld [vmem:[%s1 + $0xb0] sm:$0xf]
  %v73 = vld [vmem:[%s1 + $0xb4] sm:$0xf]
  %v74 = vld [vmem:[%s1 + $0xb8] sm:$0xf]
  %v75 = vld [vmem:[%s1 + $0xbc] sm:$0xf]
  %v84 = vunpack.c.l.b16 %v20
  %v85 = vunpack.c.h.b16 %v20
  %v86 = vunpack.c.l.b16 %v21
  %v87 = vunpack.c.l.b16 %v22
  %v88 = vunpack.c.h.b16 %v22
  %v89 = vunpack.c.l.b16 %v23
  %v90 = vunpack.c.l.b16 %v24
  %v91 = vunpack.c.h.b16 %v24
  %v92 = vunpack.c.l.b16 %v25
  %v93 = vunpack.c.l.b16 %v26
  %v94 = vunpack.c.h.b16 %v26
  %v95 = vunpack.c.l.b16 %v27
  %v96 = vpack.c.b16 %v87, %v84
  %v97 = vpack.c.b16 %v88, %v85
  %v98 = vpack.c.b16 %v89, %v86
  %v99 = vpack.c.b16 %v93, %v90
  %v100 = vpack.c.b16 %v94, %v91
  %v101 = vpack.c.b16 %v95, %v92
  %v156 = vunpack.c.l.b16 %v28
  %v157 = vunpack.c.l.b16 %v29
  %v158 = vunpack.c.l.b16 %v30
  %v159 = vunpack.c.l.b16 %v31
  %v160 = vunpack.c.l.b16 %v32
  %v161 = vunpack.c.l.b16 %v33
  %v162 = vunpack.c.l.b16 %v34
  %v163 = vunpack.c.l.b16 %v35
  %v164 = vunpack.c.l.b16 %v36
  %v165 = vunpack.c.l.b16 %v37
  %v166 = vunpack.c.l.b16 %v38
  %v167 = vunpack.c.l.b16 %v39
  %v168 = vunpack.c.l.b16 %v40
  %v169 = vunpack.c.l.b16 %v41
  %v170 = vunpack.c.l.b16 %v42
  %v171 = vunpack.c.l.b16 %v43
  %v172 = vunpack.c.l.b16 %v44
  %v173 = vunpack.c.l.b16 %v45
  %v174 = vunpack.c.l.b16 %v46
  %v175 = vunpack.c.l.b16 %v47
  %v176 = vunpack.c.l.b16 %v48
  %v177 = vunpack.c.l.b16 %v49
  %v178 = vunpack.c.l.b16 %v50
  %v179 = vunpack.c.l.b16 %v51
  %v180 = vunpack.c.l.b16 %v52
  %v181 = vunpack.c.l.b16 %v53
  %v182 = vunpack.c.l.b16 %v54
  %v183 = vunpack.c.l.b16 %v55
  %v184 = vunpack.c.l.b16 %v56
  %v185 = vunpack.c.l.b16 %v57
  %v186 = vunpack.c.l.b16 %v58
  %v187 = vunpack.c.l.b16 %v59
  %v188 = vunpack.c.l.b16 %v60
  %v189 = vunpack.c.l.b16 %v61
  %v190 = vunpack.c.l.b16 %v62
  %v191 = vunpack.c.l.b16 %v63
  %v192 = vunpack.c.l.b16 %v64
  %v193 = vunpack.c.l.b16 %v65
  %v194 = vunpack.c.l.b16 %v66
  %v195 = vunpack.c.l.b16 %v67
  %v196 = vunpack.c.l.b16 %v68
  %v197 = vunpack.c.l.b16 %v69
  %v198 = vunpack.c.l.b16 %v70
  %v199 = vunpack.c.l.b16 %v71
  %v200 = vunpack.c.l.b16 %v72
  %v201 = vunpack.c.l.b16 %v73
  %v202 = vunpack.c.l.b16 %v74
  %v203 = vunpack.c.l.b16 %v75
  %v204 = vpack.c.b16 %v157, %v156
  %v205 = vpack.c.b16 %v159, %v158
  %v206 = vpack.c.b16 %v161, %v160
  %v207 = vpack.c.b16 %v163, %v162
  %v208 = vpack.c.b16 %v165, %v164
  %v209 = vpack.c.b16 %v167, %v166
  %v210 = vpack.c.b16 %v169, %v168
  %v211 = vpack.c.b16 %v171, %v170
  %v212 = vpack.c.b16 %v173, %v172
  %v213 = vpack.c.b16 %v175, %v174
  %v214 = vpack.c.b16 %v177, %v176
  %v215 = vpack.c.b16 %v179, %v178
  %v216 = vpack.c.b16 %v181, %v180
  %v217 = vpack.c.b16 %v183, %v182
  %v218 = vpack.c.b16 %v185, %v184
  %v219 = vpack.c.b16 %v187, %v186
  %v220 = vpack.c.b16 %v189, %v188
  %v221 = vpack.c.b16 %v191, %v190
  %v222 = vpack.c.b16 %v193, %v192
  %v223 = vpack.c.b16 %v195, %v194
  %v224 = vpack.c.b16 %v197, %v196
  %v225 = vpack.c.b16 %v199, %v198
  %v226 = vpack.c.b16 %v201, %v200
  %v227 = vpack.c.b16 %v203, %v202
  %252 = vmatprep.subr.bf16.mxu0 0
  %253 = vmatpush1.bf16.msra.mxu0 %v211
  %254 = vmatprep.subr.bf16.mxu0 0
  %255 = vmatpush1.bf16.msra.mxu0 %v210
  %256 = vmatprep.subr.bf16.mxu0 0
  %257 = vmatpush1.bf16.msra.mxu0 %v209
  %258 = vmatprep.subr.bf16.mxu0 0
  %259 = vmatpush1.bf16.msra.mxu0 %v208
  %260 = vmatprep.subr.bf16.mxu0 0
  %261 = vmatpush1.bf16.msra.mxu0 %v207
  %262 = vmatprep.subr.bf16.mxu0 0
  %263 = vmatpush1.bf16.msra.mxu0 %v206
  %264 = vmatprep.subr.bf16.mxu0 0
  %265 = vmatpush1.bf16.msra.mxu0 %v205
  %266 = vmatprep.subr.bf16.mxu0 0
  %267 = vmatpush1.bf16.msra.mxu0 %v204
  %268 = vmatprep.subr.bf16.mxu0 0
  %269 = vmatpush2.bf16.msra.mxu0 %v219
  %270 = vmatprep.subr.bf16.mxu0 0
  %271 = vmatpush2.bf16.msra.mxu0 %v218
  %272 = vmatprep.subr.bf16.mxu0 0
  %273 = vmatpush2.bf16.msra.mxu0 %v217
  %274 = vmatprep.subr.bf16.mxu0 0
  %275 = vmatpush2.bf16.msra.mxu0 %v216
  %276 = vmatprep.subr.bf16.mxu0 0
  %277 = vmatpush2.bf16.msra.mxu0 %v215
  %278 = vmatprep.subr.bf16.mxu0 0
  %279 = vmatpush2.bf16.msra.mxu0 %v214
  %280 = vmatprep.subr.bf16.mxu0 0
  %281 = vmatpush2.bf16.msra.mxu0 %v213
  %282 = vmatprep.subr.bf16.mxu0 0
  %283 = vmatpush2.bf16.msra.mxu0 %v212
  %284 = vmatprep.mubr.bf16.mxu0 %v97
  %285 = vmatmul.mubr.bf16.gmra.mxu0 %v96
  %v286 = vpop.f32.mrf.mxu0
  %v287 = vadd.f32 0.0, %v286
  %v288 = vpop.f32.mrf.mxu0
  %v289 = vpop.f32.mrf.mxu0
  %v290 = vadd.f32 0.0, %v289
  %v291 = vpop.f32.mrf.mxu0
  %292 = vmatprep.mubr.bf16.mxu0 %v100
  %293 = vmatmul.mubr.bf16.gmra.mxu0 %v99
  %v294 = vpop.f32.mrf.mxu0
  %v295 = vadd.f32 0.0, %v294
  %v296 = vpop.f32.mrf.mxu0
  %v297 = vpop.f32.mrf.mxu0
  %v298 = vadd.f32 0.0, %v297
  %v299 = vpop.f32.mrf.mxu0
  %300 = vdwg.mxu0
  %301 = vmatprep.subr.bf16.mxu0 0
  %302 = vmatpush1.bf16.msra.mxu0 %v227
  %303 = vmatprep.subr.bf16.mxu0 0
  %304 = vmatpush1.bf16.msra.mxu0 %v226
  %305 = vmatprep.subr.bf16.mxu0 0
  %306 = vmatpush1.bf16.msra.mxu0 %v225
  %307 = vmatprep.subr.bf16.mxu0 0
  %308 = vmatpush1.bf16.msra.mxu0 %v224
  %309 = vmatprep.subr.bf16.mxu0 0
  %310 = vmatpush1.bf16.msra.mxu0 %v223
  %311 = vmatprep.subr.bf16.mxu0 0
  %312 = vmatpush1.bf16.msra.mxu0 %v222
  %313 = vmatprep.subr.bf16.mxu0 0
  %314 = vmatpush1.bf16.msra.mxu0 %v221
  %315 = vmatprep.subr.bf16.mxu0 0
  %316 = vmatpush1.bf16.msra.mxu0 %v220
  %317 = vmatprep.subr.bf16.mxu0 0
  %318 = vmatpush2.bf16.msra.mxu0 0
  %319 = vmatprep.subr.bf16.mxu0 0
  %320 = vmatpush2.bf16.msra.mxu0 0
  %321 = vmatprep.subr.bf16.mxu0 0
  %322 = vmatpush2.bf16.msra.mxu0 0
  %323 = vmatprep.subr.bf16.mxu0 0
  %324 = vmatpush2.bf16.msra.mxu0 0
  %325 = vmatprep.subr.bf16.mxu0 0
  %326 = vmatpush2.bf16.msra.mxu0 0
  %327 = vmatprep.subr.bf16.mxu0 0
  %328 = vmatpush2.bf16.msra.mxu0 0
  %329 = vmatprep.subr.bf16.mxu0 0
  %330 = vmatpush2.bf16.msra.mxu0 0
  %331 = vmatprep.subr.bf16.mxu0 0
  %332 = vmatpush2.bf16.msra.mxu0 0
  %333 = vmatprep.mubr.bf16.mxu0 0
  %334 = vmatmul.mubr.bf16.gmra.mxu0 %v98
  %v335 = vpop.f32.mrf.mxu0
  %v336 = vadd.f32 %v287, %v335
  %v337 = vpop.f32.mrf.mxu0
  %v338 = vpop.f32.mrf.mxu0
  %v339 = vadd.f32 %v290, %v338
  %v340 = vpop.f32.mrf.mxu0
  %341 = vmatprep.mubr.bf16.mxu0 0
  %342 = vmatmul.mubr.bf16.gmra.mxu0 %v101
  %v343 = vpop.f32.mrf.mxu0
  %v344 = vadd.f32 %v295, %v343
  %v345 = vpop.f32.mrf.mxu0
  %v346 = vpop.f32.mrf.mxu0
  %v347 = vadd.f32 %v298, %v346
  %v348 = vpop.f32.mrf.mxu0
  %349 = vdwg.mxu0
  %v350 = vld [vmem:[%s2] sm:$0x1]
  %v351 = vadd.f32 %v336, %v339
  %v352 = vadd.f32 %v351, %v344
  %v353 = vadd.f32 %v352, %v347
  %v354 = vrot.slane %v353, 4
  %v355 = vadd.f32 %v353, %v354
  %v356 = vrot.slane %v355, 2
  %v357 = vadd.f32 %v355, %v356
  %v358 = vrot.slane %v357, 1
  %v359 = vadd.f32 %v357, %v358
  %v360 = vadd.f32 %v350, %v359
  %361 = vst [vmem:[%s2] sm:$0x1] %v360
  %v362 = vld [vmem:[%s3] sm:$0x1]
  %v363 = vmul.f32 %v336, %v336
  %v364 = vmul.f32 %v339, %v339
  %v365 = vmul.f32 %v344, %v344
  %v366 = vmul.f32 %v347, %v347
  %v367 = vadd.f32 %v363, %v364
  %v368 = vadd.f32 %v367, %v365
  %v369 = vadd.f32 %v368, %v366
  %v370 = vrot.slane %v369, 4
  %v371 = vadd.f32 %v369, %v370
  %v372 = vrot.slane %v371, 2
  %v373 = vadd.f32 %v371, %v372
  %v374 = vrot.slane %v373, 1
  %v375 = vadd.f32 %v373, %v374
  %v376 = vadd.f32 %v362, %v375
  %377 = vst [vmem:[%s3] sm:$0x1] %v376
  // Predicated region
  $region14: #{d_get_logits_forward.2} parent=0 // pred_check
    _
  $region15: #{d_get_logits_forward.2} parent=0 // pred_check_branch
    %379 = sbr.rel (0) target = $region17
  $region16: #{d_get_logits_forward.2} parent=0 // pred_region
    _
  $region17: #{d_get_logits_forward.2} parent=0 // pred_fallthru
    _
  // Predicated region
  $region18: #{d_get_logits_forward.2} parent=0 // pred_check
    _
  $region19: #{d_get_logits_forward.2} parent=0 // pred_check_branch
    %381 = sbr.rel (0) target = $region21
  $region20: #{d_get_logits_forward.2} parent=0 // pred_region
    _
  $region21: #{d_get_logits_forward.2} parent=0 // pred_fallthru
    _
  // Predicated region
  $region22: #{d_get_logits_forward.2} parent=0 // pred_check
    _
  $region23: #{d_get_logits_forward.2} parent=0 // pred_check_branch
    %383 = sbr.rel (0) target = $region25
  $region24: #{d_get_logits_forward.2} parent=0 // pred_region
    _
  $region25: #{d_get_logits_forward.2} parent=0 // pred_fallthru
    _
  // Predicated region
  $region26: #{d_get_logits_forward.2} parent=0 // pred_check
    _
  $region27: #{d_get_logits_forward.2} parent=0 // pred_check_branch
    %385 = sbr.rel (0) target = $region29
  $region28: #{d_get_logits_forward.2} parent=0 // pred_region
    _
  $region29: #{d_get_logits_forward.2} parent=0 // pred_fallthru
    _

// kernel: d_get_logits_forward.3
$region0: #{d_get_logits_forward.3}
  #allocation0 [shape = 'u32[]', space=smem, size = 0x4, offset = 0x4, fixed_abs, tag = 'smem constant byte address 0x4 - core index']
  #allocation1 [shape = 'u32[144,128]{1,0:T(1,128)}', space=vmem, size = 0x12000, scoped, tag = 'internal scratch']
  #allocation2 [shape = 'f32[1]{0:T(128)S(6)}', space=smem, size = 0x200, scoped, tag = 'scoped memory for d_get_logits_forward.3']
  %s0 = inlined_call_operand.vmem [shape: bf16[32,384], index: 0, kind: input, shape index: {}]
  %s1 = inlined_call_operand.vmem [shape: bf16[384,128], index: 1, kind: input, shape index: {}]
  %s2 = inlined_call_operand.vmem [shape: f32[1,128], index: 2, kind: input, shape index: {}]
  %s3 = inlined_call_operand.vmem [shape: f32[1,128], index: 3, kind: input, shape index: {}]
  %s4 = inlined_call_operand.vmem [shape: bf16[16,128], index: 4, kind: input, shape index: {}]
  %s5 = inlined_call_operand.<no memory space> [shape: f32[1], index: 5, kind: input, shape index: {}]
  %s6 = inlined_call_operand.vmem [shape: f32[2,128], index: 6, kind: output, shape index: {}]
  %s7 = sld [smem:[#allocation0]]
  $region34: #{d_get_logits_forward.3} parent=0
    _
  %s9 = ssub.s32 1, %s7
  %s10 = scalar_select 0, %s9, %s7
  %11 = sst [smem:[#allocation2]] %s5
  // Predicated region
  $region2: #{d_get_logits_forward.3} parent=0 // pred_check
    _
  $region3: #{d_get_logits_forward.3} parent=0 // pred_check_branch
    %13 = sbr.rel (0) target = $region5
  $region4: #{d_get_logits_forward.3} parent=0 // pred_region
    _
  $region5: #{d_get_logits_forward.3} parent=0 // pred_fallthru
    _
  // Predicated region
  $region6: #{d_get_logits_forward.3} parent=0 // pred_check
    _
  $region7: #{d_get_logits_forward.3} parent=0 // pred_check_branch
    %15 = sbr.rel (0) target = $region9
  $region8: #{d_get_logits_forward.3} parent=0 // pred_region
    _
  $region9: #{d_get_logits_forward.3} parent=0 // pred_fallthru
    _
  // Predicated region
  $region10: #{d_get_logits_forward.3} parent=0 // pred_check
    _
  $region11: #{d_get_logits_forward.3} parent=0 // pred_check_branch
    %17 = sbr.rel (0) target = $region13
  $region12: #{d_get_logits_forward.3} parent=0 // pred_region
    _
  $region13: #{d_get_logits_forward.3} parent=0 // pred_fallthru
    _
  // Predicated region
  $region14: #{d_get_logits_forward.3} parent=0 // pred_check
    _
  $region15: #{d_get_logits_forward.3} parent=0 // pred_check_branch
    %19 = sbr.rel (0) target = $region17
  $region16: #{d_get_logits_forward.3} parent=0 // pred_region
    _
  $region17: #{d_get_logits_forward.3} parent=0 // pred_fallthru
    _
  // Predicated region
  $region18: #{d_get_logits_forward.3} parent=0 // pred_check
    _
  $region19: #{d_get_logits_forward.3} parent=0 // pred_check_branch
    %21 = sbr.rel (0) target = $region21
  $region20: #{d_get_logits_forward.3} parent=0 // pred_region
    _
  $region21: #{d_get_logits_forward.3} parent=0 // pred_fallthru
    _
  // Predicated region
  $region22: #{d_get_logits_forward.3} parent=0 // pred_check
    _
  $region23: #{d_get_logits_forward.3} parent=0 // pred_check_branch
    %23 = sbr.rel (0) target = $region25
  $region24: #{d_get_logits_forward.3} parent=0 // pred_region
    _
  $region25: #{d_get_logits_forward.3} parent=0 // pred_fallthru
    _
  %v25 = vld [vmem:[%s0] sm:$0xff]
  %v26 = vld [vmem:[%s0 + $0x8] sm:$0xf]
  %v27 = vld [vmem:[%s0 + $0xc] sm:$0xff]
  %v28 = vld [vmem:[%s0 + $0x14] sm:$0xf]
  %v29 = vld [vmem:[%s0 + $0x18] sm:$0xff]
  %v30 = vld [vmem:[%s0 + $0x20] sm:$0xf]
  %v31 = vld [vmem:[%s0 + $0x24] sm:$0xff]
  %v32 = vld [vmem:[%s0 + $0x2c] sm:$0xf]
  %v33 = vld [vmem:[%s1] sm:$0xf]
  %v34 = vld [vmem:[%s1 + $0x4] sm:$0xf]
  %v35 = vld [vmem:[%s1 + $0x8] sm:$0xf]
  %v36 = vld [vmem:[%s1 + $0xc] sm:$0xf]
  %v37 = vld [vmem:[%s1 + $0x10] sm:$0xf]
  %v38 = vld [vmem:[%s1 + $0x14] sm:$0xf]
  %v39 = vld [vmem:[%s1 + $0x18] sm:$0xf]
  %v40 = vld [vmem:[%s1 + $0x1c] sm:$0xf]
  %v41 = vld [vmem:[%s1 + $0x20] sm:$0xf]
  %v42 = vld [vmem:[%s1 + $0x24] sm:$0xf]
  %v43 = vld [vmem:[%s1 + $0x28] sm:$0xf]
  %v44 = vld [vmem:[%s1 + $0x2c] sm:$0xf]
  %v45 = vld [vmem:[%s1 + $0x30] sm:$0xf]
  %v46 = vld [vmem:[%s1 + $0x34] sm:$0xf]
  %v47 = vld [vmem:[%s1 + $0x38] sm:$0xf]
  %v48 = vld [vmem:[%s1 + $0x3c] sm:$0xf]
  %v49 = vld [vmem:[%s1 + $0x40] sm:$0xf]
  %v50 = vld [vmem:[%s1 + $0x44] sm:$0xf]
  %v51 = vld [vmem:[%s1 + $0x48] sm:$0xf]
  %v52 = vld [vmem:[%s1 + $0x4c] sm:$0xf]
  %v53 = vld [vmem:[%s1 + $0x50] sm:$0xf]
  %v54 = vld [vmem:[%s1 + $0x54] sm:$0xf]
  %v55 = vld [vmem:[%s1 + $0x58] sm:$0xf]
  %v56 = vld [vmem:[%s1 + $0x5c] sm:$0xf]
  %v57 = vld [vmem:[%s1 + $0x60] sm:$0xf]
  %v58 = vld [vmem:[%s1 + $0x64] sm:$0xf]
  %v59 = vld [vmem:[%s1 + $0x68] sm:$0xf]
  %v60 = vld [vmem:[%s1 + $0x6c] sm:$0xf]
  %v61 = vld [vmem:[%s1 + $0x70] sm:$0xf]
  %v62 = vld [vmem:[%s1 + $0x74] sm:$0xf]
  %v63 = vld [vmem:[%s1 + $0x78] sm:$0xf]
  %v64 = vld [vmem:[%s1 + $0x7c] sm:$0xf]
  %v65 = vld [vmem:[%s1 + $0x80] sm:$0xf]
  %v66 = vld [vmem:[%s1 + $0x84] sm:$0xf]
  %v67 = vld [vmem:[%s1 + $0x88] sm:$0xf]
  %v68 = vld [vmem:[%s1 + $0x8c] sm:$0xf]
  %v69 = vld [vmem:[%s1 + $0x90] sm:$0xf]
  %v70 = vld [vmem:[%s1 + $0x94] sm:$0xf]
  %v71 = vld [vmem:[%s1 + $0x98] sm:$0xf]
  %v72 = vld [vmem:[%s1 + $0x9c] sm:$0xf]
  %v73 = vld [vmem:[%s1 + $0xa0] sm:$0xf]
  %v74 = vld [vmem:[%s1 + $0xa4] sm:$0xf]
  %v75 = vld [vmem:[%s1 + $0xa8] sm:$0xf]
  %v76 = vld [vmem:[%s1 + $0xac] sm:$0xf]
  %v77 = vld [vmem:[%s1 + $0xb0] sm:$0xf]
  %v78 = vld [vmem:[%s1 + $0xb4] sm:$0xf]
  %v79 = vld [vmem:[%s1 + $0xb8] sm:$0xf]
  %v80 = vld [vmem:[%s1 + $0xbc] sm:$0xf]
  %v89 = vunpack.c.l.b16 %v25
  %v90 = vunpack.c.h.b16 %v25
  %v91 = vunpack.c.l.b16 %v26
  %v92 = vunpack.c.l.b16 %v27
  %v93 = vunpack.c.h.b16 %v27
  %v94 = vunpack.c.l.b16 %v28
  %v95 = vunpack.c.l.b16 %v29
  %v96 = vunpack.c.h.b16 %v29
  %v97 = vunpack.c.l.b16 %v30
  %v98 = vunpack.c.l.b16 %v31
  %v99 = vunpack.c.h.b16 %v31
  %v100 = vunpack.c.l.b16 %v32
  %v101 = vpack.c.b16 %v92, %v89
  %v102 = vpack.c.b16 %v93, %v90
  %v103 = vpack.c.b16 %v94, %v91
  %v104 = vpack.c.b16 %v98, %v95
  %v105 = vpack.c.b16 %v99, %v96
  %v106 = vpack.c.b16 %v100, %v97
  %v161 = vunpack.c.l.b16 %v33
  %v162 = vunpack.c.l.b16 %v34
  %v163 = vunpack.c.l.b16 %v35
  %v164 = vunpack.c.l.b16 %v36
  %v165 = vunpack.c.l.b16 %v37
  %v166 = vunpack.c.l.b16 %v38
  %v167 = vunpack.c.l.b16 %v39
  %v168 = vunpack.c.l.b16 %v40
  %v169 = vunpack.c.l.b16 %v41
  %v170 = vunpack.c.l.b16 %v42
  %v171 = vunpack.c.l.b16 %v43
  %v172 = vunpack.c.l.b16 %v44
  %v173 = vunpack.c.l.b16 %v45
  %v174 = vunpack.c.l.b16 %v46
  %v175 = vunpack.c.l.b16 %v47
  %v176 = vunpack.c.l.b16 %v48
  %v177 = vunpack.c.l.b16 %v49
  %v178 = vunpack.c.l.b16 %v50
  %v179 = vunpack.c.l.b16 %v51
  %v180 = vunpack.c.l.b16 %v52
  %v181 = vunpack.c.l.b16 %v53
  %v182 = vunpack.c.l.b16 %v54
  %v183 = vunpack.c.l.b16 %v55
  %v184 = vunpack.c.l.b16 %v56
  %v185 = vunpack.c.l.b16 %v57
  %v186 = vunpack.c.l.b16 %v58
  %v187 = vunpack.c.l.b16 %v59
  %v188 = vunpack.c.l.b16 %v60
  %v189 = vunpack.c.l.b16 %v61
  %v190 = vunpack.c.l.b16 %v62
  %v191 = vunpack.c.l.b16 %v63
  %v192 = vunpack.c.l.b16 %v64
  %v193 = vunpack.c.l.b16 %v65
  %v194 = vunpack.c.l.b16 %v66
  %v195 = vunpack.c.l.b16 %v67
  %v196 = vunpack.c.l.b16 %v68
  %v197 = vunpack.c.l.b16 %v69
  %v198 = vunpack.c.l.b16 %v70
  %v199 = vunpack.c.l.b16 %v71
  %v200 = vunpack.c.l.b16 %v72
  %v201 = vunpack.c.l.b16 %v73
  %v202 = vunpack.c.l.b16 %v74
  %v203 = vunpack.c.l.b16 %v75
  %v204 = vunpack.c.l.b16 %v76
  %v205 = vunpack.c.l.b16 %v77
  %v206 = vunpack.c.l.b16 %v78
  %v207 = vunpack.c.l.b16 %v79
  %v208 = vunpack.c.l.b16 %v80
  %v209 = vpack.c.b16 %v162, %v161
  %v210 = vpack.c.b16 %v164, %v163
  %v211 = vpack.c.b16 %v166, %v165
  %v212 = vpack.c.b16 %v168, %v167
  %v213 = vpack.c.b16 %v170, %v169
  %v214 = vpack.c.b16 %v172, %v171
  %v215 = vpack.c.b16 %v174, %v173
  %v216 = vpack.c.b16 %v176, %v175
  %v217 = vpack.c.b16 %v178, %v177
  %v218 = vpack.c.b16 %v180, %v179
  %v219 = vpack.c.b16 %v182, %v181
  %v220 = vpack.c.b16 %v184, %v183
  %v221 = vpack.c.b16 %v186, %v185
  %v222 = vpack.c.b16 %v188, %v187
  %v223 = vpack.c.b16 %v190, %v189
  %v224 = vpack.c.b16 %v192, %v191
  %v225 = vpack.c.b16 %v194, %v193
  %v226 = vpack.c.b16 %v196, %v195
  %v227 = vpack.c.b16 %v198, %v197
  %v228 = vpack.c.b16 %v200, %v199
  %v229 = vpack.c.b16 %v202, %v201
  %v230 = vpack.c.b16 %v204, %v203
  %v231 = vpack.c.b16 %v206, %v205
  %v232 = vpack.c.b16 %v208, %v207
  %257 = vmatprep.subr.bf16.mxu0 0
  %258 = vmatpush1.bf16.msra.mxu0 %v216
  %259 = vmatprep.subr.bf16.mxu0 0
  %260 = vmatpush1.bf16.msra.mxu0 %v215
  %261 = vmatprep.subr.bf16.mxu0 0
  %262 = vmatpush1.bf16.msra.mxu0 %v214
  %263 = vmatprep.subr.bf16.mxu0 0
  %264 = vmatpush1.bf16.msra.mxu0 %v213
  %265 = vmatprep.subr.bf16.mxu0 0
  %266 = vmatpush1.bf16.msra.mxu0 %v212
  %267 = vmatprep.subr.bf16.mxu0 0
  %268 = vmatpush1.bf16.msra.mxu0 %v211
  %269 = vmatprep.subr.bf16.mxu0 0
  %270 = vmatpush1.bf16.msra.mxu0 %v210
  %271 = vmatprep.subr.bf16.mxu0 0
  %272 = vmatpush1.bf16.msra.mxu0 %v209
  %273 = vmatprep.subr.bf16.mxu0 0
  %274 = vmatpush2.bf16.msra.mxu0 %v224
  %275 = vmatprep.subr.bf16.mxu0 0
  %276 = vmatpush2.bf16.msra.mxu0 %v223
  %277 = vmatprep.subr.bf16.mxu0 0
  %278 = vmatpush2.bf16.msra.mxu0 %v222
  %279 = vmatprep.subr.bf16.mxu0 0
  %280 = vmatpush2.bf16.msra.mxu0 %v221
  %281 = vmatprep.subr.bf16.mxu0 0
  %282 = vmatpush2.bf16.msra.mxu0 %v220
  %283 = vmatprep.subr.bf16.mxu0 0
  %284 = vmatpush2.bf16.msra.mxu0 %v219
  %285 = vmatprep.subr.bf16.mxu0 0
  %286 = vmatpush2.bf16.msra.mxu0 %v218
  %287 = vmatprep.subr.bf16.mxu0 0
  %288 = vmatpush2.bf16.msra.mxu0 %v217
  %289 = vmatprep.mubr.bf16.mxu0 %v102
  %290 = vmatmul.mubr.bf16.gmra.mxu0 %v101
  %v291 = vpop.f32.mrf.mxu0
  %v292 = vadd.f32 0.0, %v291
  %v293 = vpop.f32.mrf.mxu0
  %v294 = vpop.f32.mrf.mxu0
  %v295 = vadd.f32 0.0, %v294
  %v296 = vpop.f32.mrf.mxu0
  %297 = vmatprep.mubr.bf16.mxu0 %v105
  %298 = vmatmul.mubr.bf16.gmra.mxu0 %v104
  %v299 = vpop.f32.mrf.mxu0
  %v300 = vadd.f32 0.0, %v299
  %v301 = vpop.f32.mrf.mxu0
  %v302 = vpop.f32.mrf.mxu0
  %v303 = vadd.f32 0.0, %v302
  %v304 = vpop.f32.mrf.mxu0
  %305 = vdwg.mxu0
  %306 = vmatprep.subr.bf16.mxu0 0
  %307 = vmatpush1.bf16.msra.mxu0 %v232
  %308 = vmatprep.subr.bf16.mxu0 0
  %309 = vmatpush1.bf16.msra.mxu0 %v231
  %310 = vmatprep.subr.bf16.mxu0 0
  %311 = vmatpush1.bf16.msra.mxu0 %v230
  %312 = vmatprep.subr.bf16.mxu0 0
  %313 = vmatpush1.bf16.msra.mxu0 %v229
  %314 = vmatprep.subr.bf16.mxu0 0
  %315 = vmatpush1.bf16.msra.mxu0 %v228
  %316 = vmatprep.subr.bf16.mxu0 0
  %317 = vmatpush1.bf16.msra.mxu0 %v227
  %318 = vmatprep.subr.bf16.mxu0 0
  %319 = vmatpush1.bf16.msra.mxu0 %v226
  %320 = vmatprep.subr.bf16.mxu0 0
  %321 = vmatpush1.bf16.msra.mxu0 %v225
  %322 = vmatprep.subr.bf16.mxu0 0
  %323 = vmatpush2.bf16.msra.mxu0 0
  %324 = vmatprep.subr.bf16.mxu0 0
  %325 = vmatpush2.bf16.msra.mxu0 0
  %326 = vmatprep.subr.bf16.mxu0 0
  %327 = vmatpush2.bf16.msra.mxu0 0
  %328 = vmatprep.subr.bf16.mxu0 0
  %329 = vmatpush2.bf16.msra.mxu0 0
  %330 = vmatprep.subr.bf16.mxu0 0
  %331 = vmatpush2.bf16.msra.mxu0 0
  %332 = vmatprep.subr.bf16.mxu0 0
  %333 = vmatpush2.bf16.msra.mxu0 0
  %334 = vmatprep.subr.bf16.mxu0 0
  %335 = vmatpush2.bf16.msra.mxu0 0
  %336 = vmatprep.subr.bf16.mxu0 0
  %337 = vmatpush2.bf16.msra.mxu0 0
  %338 = vmatprep.mubr.bf16.mxu0 0
  %339 = vmatmul.mubr.bf16.gmra.mxu0 %v103
  %v340 = vpop.f32.mrf.mxu0
  %v341 = vadd.f32 %v292, %v340
  %v342 = vpop.f32.mrf.mxu0
  %v343 = vpop.f32.mrf.mxu0
  %v344 = vadd.f32 %v295, %v343
  %v345 = vpop.f32.mrf.mxu0
  %346 = vmatprep.mubr.bf16.mxu0 0
  %347 = vmatmul.mubr.bf16.gmra.mxu0 %v106
  %v348 = vpop.f32.mrf.mxu0
  %v349 = vadd.f32 %v300, %v348
  %v350 = vpop.f32.mrf.mxu0
  %v351 = vpop.f32.mrf.mxu0
  %v352 = vadd.f32 %v303, %v351
  %v353 = vpop.f32.mrf.mxu0
  %354 = vdwg.mxu0
  %v355 = vld [vmem:[%s2] sm:$0x1]
  %v357 = vlaneseq
  %v358 = vshrl.u32 %v357, 7
  %v359 = vsub.s32 0, %v358
  %v360 = vrot.slane %v355, %v359
  %v362 = vmul.f32 %v341, %v360
  %v363 = vmul.f32 %v344, %v360
  %v364 = vmul.f32 %v349, %v360
  %v365 = vmul.f32 %v352, %v360
  %v366 = vld [vmem:[%s3] sm:$0x1]
  %v368 = vlaneseq
  %v369 = vshrl.u32 %v368, 7
  %v370 = vsub.s32 0, %v369
  %v371 = vrot.slane %v366, %v370
  %v373 = vadd.f32 %v362, %v371
  %v374 = vadd.f32 %v363, %v371
  %v375 = vadd.f32 %v364, %v371
  %v376 = vadd.f32 %v365, %v371
  %v377 = vmul.f32 %v373, 0.2
  %v378 = vmul.f32 %v374, 0.2
  %v379 = vmul.f32 %v375, 0.2
  %v380 = vmul.f32 %v376, 0.2
  %v381 = vmax.f32 %v373, %v377
  %v382 = vmax.f32 %v374, %v378
  %v383 = vmax.f32 %v375, %v379
  %v384 = vmax.f32 %v376, %v380
  %v385 = vld [vmem:[%s4] sm:$0xf]
  %v386 = vld [vmem:[%s4 + $0x4] sm:$0xf]
  %v387 = vunpack.c.l.bf16 %v385
  %v388 = vunpack.c.l.bf16 %v386
  %v389 = vmul.f32 %v381, %v387
  %v390 = vmul.f32 %v382, %v388
  %v391 = vmul.f32 %v383, %v387
  %v392 = vmul.f32 %v384, %v388
  %v393 = vadd.f32 %v389, %v390
  %v394 = vrot.slane %v393, 4
  %v395 = vadd.f32 %v393, %v394
  %v396 = vrot.slane %v395, 2
  %v397 = vadd.f32 %v395, %v396
  %v398 = vrot.slane %v397, 1
  %v399 = vadd.f32 %v397, %v398
  %v400 = vadd.f32 %v391, %v392
  %v401 = vrot.slane %v400, 4
  %v402 = vadd.f32 %v400, %v401
  %v403 = vrot.slane %v402, 2
  %v404 = vadd.f32 %v402, %v403
  %v405 = vrot.slane %v404, 1
  %v406 = vadd.f32 %v404, %v405
  %vm409 = vcmask 1041409
  %v410 = vsel %vm409, %v406, %v399
  %vm412 = vcmask 1041408
  %v413 = vsel %vm412, %v410, 0.0
  %414 = vadd.xlane.f32.xlu0 %v413
  %v415 = vpop.xlane.xlu0 %414
  %s416 = sld [smem:[#allocation2]]
  %v417 = vstv %s416
  %v418 = vadd.f32 %v415, %v417
  %v419 = vxor.u32 %v418, 2147483648
  %v420 = vmul.f32 %v419, 1.442695
  %v421 = vpow.pop %v420
  %v422 = vadd.f32 %v421, 1.0
  %v423 = vrcp.pop %v422
  %v424 = vmul.f32 1.0, %v423
  %425 = vst [vmem:[%s6] sm:$0x3] %v424
  // Predicated region
  $region26: #{d_get_logits_forward.3} parent=0 // pred_check
    _
  $region27: #{d_get_logits_forward.3} parent=0 // pred_check_branch
    %427 = sbr.rel (0) target = $region29
  $region28: #{d_get_logits_forward.3} parent=0 // pred_region
    _
  $region29: #{d_get_logits_forward.3} parent=0 // pred_fallthru
    _
  // Predicated region
  $region30: #{d_get_logits_forward.3} parent=0 // pred_check
    _
  $region31: #{d_get_logits_forward.3} parent=0 // pred_check_branch
    %429 = sbr.rel (0) target = $region33
  $region32: #{d_get_logits_forward.3} parent=0 // pred_region
    _
  $region33: #{d_get_logits_forward.3} parent=0 // pred_fallthru
    _

</llo_original>
